<compile_context>
chip_gen: v5e
topology: v5e:2x2
jax: 0.10.0
libtpu: 0.0.40
codegen_flags: <defaults>
</compile_context>

<pallas_src>
import jax
import jax.numpy as jnp
from jax.experimental import pallas as pl
from jax.experimental.pallas import tpu as pltpu


LATENT_DIM = 16
REPRES_DIM = 64
HIDDEN_DIM = 64

_MAX_TILE_B = 32768  # keeps double-buffered f32 tiles ~20 MiB, v7x-safe


def _round_up(n, m):
    return ((n + m - 1) // m) * m


def _num_tensorcores():
    """Best-effort detection of TensorCores per device (1 on v5e/v6e)."""
    try:
        d = jax.devices()[0]
        nc = getattr(d, "num_cores", None)
        if isinstance(nc, int) and nc > 0:
            return nc
        kind = str(getattr(d, "device_kind", "")).lower()
        if ("v7" in kind) or ("v5p" in kind) or ("v4" in kind):
            return 2
    except Exception:
        pass
    return 1


def _mlp_kernel(x_ref, w1_ref, b1_ref, w2_ref, b2_ref, o_ref):
    # x_ref : (tile_b, repres_dim) batch tile
    # w1_ref: (repres_dim, hidden), b1_ref: (1, hidden)   [VMEM-resident]
    # w2_ref: (hidden, latent),     b2_ref: (1, latent)   [VMEM-resident]
    h = jnp.dot(x_ref[...], w1_ref[...], preferred_element_type=jnp.float32)
    h = jnp.maximum(h + b1_ref[...], 0.0)                       # ReLU, f32
    # Hidden activations stay f32 into the second matmul (no re-quantization).
    o = jnp.dot(h, w2_ref[...].astype(jnp.float32),
                preferred_element_type=jnp.float32)
    o = jnp.maximum(o + b2_ref[...], 0.0)                       # ReLU, f32
    o_ref[...] = o.astype(o_ref.dtype)


def latent_detranslator_forward(x, w1, b1, w2, b2, *, tile_b=None,
                                out_dtype=None):
    """x: (B, repres_dim). Returns (B, latent_dim) in out_dtype (default x.dtype)."""
    B, R = x.shape
    assert R == w1.shape[0]
    H = w1.shape[1]
    assert H == w2.shape[0]
    L = w2.shape[1]

    if out_dtype is None:
        out_dtype = x.dtype

    ncores = _num_tensorcores()

    # ---- Batch tile selection (generation-aware, sweepable) ----------------
    if tile_b is None:
        # v7x-class (2 TCs, ~3x HBM BW) wants more bytes in flight per step.
        tile_b = 16384 if ncores >= 2 else 8192
    tile_b = _round_up(max(int(tile_b), 8), 8)
    tile_b = min(tile_b, _MAX_TILE_B)
    # Never bigger than the (sublane-rounded) batch.
    tile_b = min(tile_b, _round_up(B, 8))
    # Only on multi-TC parts: keep >= ncores grid steps so the "parallel"
    # axis actually shards across TensorCores.  Single-TC v5e/v6e keep the
    # full tile (no halving).
    if ncores > 1:
        tile_b = min(tile_b, _round_up(pl.cdiv(B, ncores), 8))
    tile_b = max(tile_b, 8)

    grid_b = pl.cdiv(B, tile_b)   # ragged tail handled by Pallas partial block

    # Biases as (1, N) f32, VMEM-resident.
    b1_2d = b1.reshape(1, H).astype(jnp.float32)
    b2_2d = b2.reshape(1, L).astype(jnp.float32)

    # ---- VMEM budget: double-buffered x + out tiles, resident weights ------
    in_bytes = jnp.dtype(x.dtype).itemsize
    out_bytes = jnp.dtype(out_dtype).itemsize
    w_bytes = 2 * ((R * H + H * L) * jnp.dtype(w1.dtype).itemsize
                   + (H + L) * 4)
    need = 2 * tile_b * R * in_bytes + 2 * tile_b * L * out_bytes + w_bytes
    vmem_limit = int(min(max(32 * 1024 * 1024, 2 * need), 48 * 1024 * 1024))

    out = pl.pallas_call(
        _mlp_kernel,
        out_shape=jax.ShapeDtypeStruct((B, L), out_dtype),
        grid_spec=pltpu.PrefetchScalarGridSpec(
            num_scalar_prefetch=0,
            grid=(grid_b,),
            in_specs=[
                pl.BlockSpec((tile_b, R), lambda i: (i, 0)),   # x batch tile
                pl.BlockSpec((R, H), lambda i: (0, 0)),        # W1 (resident)
                pl.BlockSpec((1, H), lambda i: (0, 0)),        # b1 (resident)
                pl.BlockSpec((H, L), lambda i: (0, 0)),        # W2 (resident)
                pl.BlockSpec((1, L), lambda i: (0, 0)),        # b2 (resident)
            ],
            out_specs=pl.BlockSpec((tile_b, L), lambda i: (i, 0)),
        ),
        compiler_params=pltpu.CompilerParams(
            dimension_semantics=("parallel",),
            vmem_limit_bytes=vmem_limit,
        ),
    )(x, w1, b1_2d, w2, b2_2d)

    return out


def _init_params(key):
    """Deterministic init matching nn.Linear shapes (stored transposed: (in, out))."""
    k1, k2, k3, k4 = jax.random.split(key, 4)
    lim1 = 1.0 / (REPRES_DIM ** 0.5)
    lim2 = 1.0 / (HIDDEN_DIM ** 0.5)
    w1 = jax.random.uniform(k1, (REPRES_DIM, HIDDEN_DIM), jnp.float32, -lim1, lim1)
    b1 = jax.random.uniform(k2, (HIDDEN_DIM,), jnp.float32, -lim1, lim1)
    w2 = jax.random.uniform(k3, (HIDDEN_DIM, LATENT_DIM), jnp.float32, -lim2, lim2)
    b2 = jax.random.uniform(k4, (LATENT_DIM,), jnp.float32, -lim2, lim2)
    return w1, b1, w2, b2


def _reference_forward(x, w1, b1, w2, b2):
    h = jnp.maximum(x @ w1 + b1, 0.0)
    return jnp.maximum(h @ w2 + b2, 0.0)


if __name__ == "__main__":
    key = jax.random.PRNGKey(0)
    k_x, k_p, k_x2 = jax.random.split(key, 3)
    w1, b1, w2, b2 = _init_params(k_p)

    # --- Small ragged batch (NOT a multiple of 8): exercises the cdiv grid
    # and Pallas's partial last block (no wrapper pad / slice anymore).
    B = 20
    x = jax.random.normal(k_x, (B, REPRES_DIM), dtype=jnp.float32)
    out = jax.block_until_ready(latent_detranslator_forward(x, w1, b1, w2, b2))
    ref = _reference_forward(x, w1, b1, w2, b2)
    assert out.shape == (B, LATENT_DIM)
    assert jnp.allclose(out, ref, atol=1e-5, rtol=1e-5), "f32 mismatch vs reference"

    # --- Moderate batch with an explicit smaller tile: exercises a multi-step
    # parallel grid (grid of 4) on the same code path used at scale.
    B2 = 2048
    x2 = jax.random.normal(k_x2, (B2, REPRES_DIM), dtype=jnp.float32)
    out2 = jax.block_until_ready(
        latent_detranslator_forward(x2, w1, b1, w2, b2, tile_b=512))
    ref2 = _reference_forward(x2, w1, b1, w2, b2)
    assert out2.shape == (B2, LATENT_DIM)
    assert jnp.allclose(out2, ref2, atol=1e-5, rtol=1e-5), "f32 (grid) mismatch"

    # --- Optional bf16 output stream (halves writeback); loose tolerance.
    out3 = jax.block_until_ready(
        latent_detranslator_forward(x2, w1, b1, w2, b2, out_dtype=jnp.bfloat16))
    assert out3.shape == (B2, LATENT_DIM)
    assert jnp.allclose(out3.astype(jnp.float32), ref2, atol=0.05, rtol=0.05), \
        "bf16-out mismatch vs reference"

    print("KERNEL_OK")
</pallas_src>

<mosaic_0001>
module attributes {stable_mosaic.version = 11 : i64} {
  func.func @_mlp_kernel(%arg0: i32, %arg1: memref<24x64xf32, #tpu.memory_space<vmem>>, %arg2: memref<64x64xf32, #tpu.memory_space<vmem>>, %arg3: memref<1x64xf32, #tpu.memory_space<vmem>>, %arg4: memref<64x16xf32, #tpu.memory_space<vmem>>, %arg5: memref<1x16xf32, #tpu.memory_space<vmem>>, %arg6: memref<24x16xf32, #tpu.memory_space<vmem>>) attributes {dimension_semantics = [#tpu.dimension_semantics<parallel>], iteration_bounds = array<i64: 1>, scalar_prefetch = 0 : i64, scratch_operands = 0 : i64, tpu.core_type = #tpu.core_type<tc>, window_params = [{transform_indices = @transform_0, window_bounds = array<i64: 24, 64>}, {pipeline_mode = #tpu.pipeline_mode<synchronous>, transform_indices = @transform_1, window_bounds = array<i64: 64, 64>}, {pipeline_mode = #tpu.pipeline_mode<synchronous>, transform_indices = @transform_2, window_bounds = array<i64: 1, 64>}, {pipeline_mode = #tpu.pipeline_mode<synchronous>, transform_indices = @transform_3, window_bounds = array<i64: 64, 16>}, {pipeline_mode = #tpu.pipeline_mode<synchronous>, transform_indices = @transform_4, window_bounds = array<i64: 1, 16>}, {transform_indices = @transform_5, window_bounds = array<i64: 24, 16>}]} {
    %c0 = arith.constant 0 : index
    %c0_0 = arith.constant 0 : index
    %0 = vector.load %arg1[%c0, %c0_0] : memref<24x64xf32, #tpu.memory_space<vmem>>, vector<24x64xf32>
    %c0_1 = arith.constant 0 : index
    %c0_2 = arith.constant 0 : index
    %1 = vector.load %arg2[%c0_1, %c0_2] : memref<64x64xf32, #tpu.memory_space<vmem>>, vector<64x64xf32>
    %cst = arith.constant dense<0.000000e+00> : vector<24x64xf32>
    %2 = tpu.matmul %0, %1, %cst {dimension_numbers = #tpu.dot_dimension_numbers<[1], [0], [0], [1], [0, 0, 1, 1], [], []>} : vector<24x64xf32>, vector<64x64xf32>, vector<24x64xf32> -> vector<24x64xf32>
    %c0_3 = arith.constant 0 : index
    %c0_4 = arith.constant 0 : index
    %3 = vector.load %arg3[%c0_3, %c0_4] : memref<1x64xf32, #tpu.memory_space<vmem>>, vector<1x64xf32>
    %4 = vector.broadcast %3 : vector<1x64xf32> to vector<24x64xf32>
    %5 = arith.addf %2, %4 : vector<24x64xf32>
    %cst_5 = arith.constant 0.000000e+00 : f32
    %6 = vector.broadcast %cst_5 : f32 to vector<24x64xf32>
    %7 = arith.maximumf %5, %6 : vector<24x64xf32>
    %c0_6 = arith.constant 0 : index
    %c0_7 = arith.constant 0 : index
    %8 = vector.load %arg4[%c0_6, %c0_7] : memref<64x16xf32, #tpu.memory_space<vmem>>, vector<64x16xf32>
    %cst_8 = arith.constant dense<0.000000e+00> : vector<24x16xf32>
    %9 = tpu.matmul %7, %8, %cst_8 {dimension_numbers = #tpu.dot_dimension_numbers<[1], [0], [0], [1], [0, 0, 1, 1], [], []>} : vector<24x64xf32>, vector<64x16xf32>, vector<24x16xf32> -> vector<24x16xf32>
    %c0_9 = arith.constant 0 : index
    %c0_10 = arith.constant 0 : index
    %10 = vector.load %arg5[%c0_9, %c0_10] : memref<1x16xf32, #tpu.memory_space<vmem>>, vector<1x16xf32>
    %11 = vector.broadcast %10 : vector<1x16xf32> to vector<24x16xf32>
    %12 = arith.addf %9, %11 : vector<24x16xf32>
    %cst_11 = arith.constant 0.000000e+00 : f32
    %13 = vector.broadcast %cst_11 : f32 to vector<24x16xf32>
    %14 = arith.maximumf %12, %13 : vector<24x16xf32>
    %c0_12 = arith.constant 0 : index
    %c0_13 = arith.constant 0 : index
    %15 = vector.load %arg6[%c0_12, %c0_13] : memref<24x16xf32, #tpu.memory_space<vmem>>, vector<24x16xf32>
    tpu.vector_store %arg6[%c0_12, %c0_13], %14 {strides = array<i32>} : memref<24x16xf32, #tpu.memory_space<vmem>>, vector<24x16xf32>,
    return
  }
  func.func @transform_0(%arg0: i32) -> (i32, i32) {
    %c0_i32 = arith.constant 0 : i32
    %c0_i32_0 = arith.constant 0 : i32
    return %arg0, %c0_i32 : i32, i32
  }
  func.func @transform_1(%arg0: i32) -> (i32, i32) {
    %c0_i32 = arith.constant 0 : i32
    %c0_i32_0 = arith.constant 0 : i32
    %c0_i32_1 = arith.constant 0 : i32
    return %c0_i32, %c0_i32_0 : i32, i32
  }
  func.func @transform_2(%arg0: i32) -> (i32, i32) {
    %c0_i32 = arith.constant 0 : i32
    %c0_i32_0 = arith.constant 0 : i32
    %c0_i32_1 = arith.constant 0 : i32
    return %c0_i32, %c0_i32_0 : i32, i32
  }
  func.func @transform_3(%arg0: i32) -> (i32, i32) {
    %c0_i32 = arith.constant 0 : i32
    %c0_i32_0 = arith.constant 0 : i32
    %c0_i32_1 = arith.constant 0 : i32
    return %c0_i32, %c0_i32_0 : i32, i32
  }
  func.func @transform_4(%arg0: i32) -> (i32, i32) {
    %c0_i32 = arith.constant 0 : i32
    %c0_i32_0 = arith.constant 0 : i32
    %c0_i32_1 = arith.constant 0 : i32
    return %c0_i32, %c0_i32_0 : i32, i32
  }
  func.func @transform_5(%arg0: i32) -> (i32, i32) {
    %c0_i32 = arith.constant 0 : i32
    %c0_i32_0 = arith.constant 0 : i32
    return %arg0, %c0_i32 : i32, i32
  }
}

</mosaic_0001>

<llo_original>
// kernel: tpu_custom_call.1
$region0: #{tpu_custom_call.1}
  #allocation0 [shape = 'u32[]', space=smem, size = 0x4, offset = 0x4, fixed_abs, tag = 'smem constant byte address 0x4 - core index']
  #allocation1 [shape = 'u32[72,128]{1,0:T(1,128)}', space=vmem, size = 0x9000, scoped, tag = 'internal scratch']
  %s0 = inlined_call_operand.hbm [shape: f32[20,64], index: 0, kind: input, shape index: {}]
  %s1 = inlined_call_operand.vmem [shape: f32[64,64], index: 1, kind: input, shape index: {}]
  %s2 = inlined_call_operand.vmem [shape: f32[1,64], index: 2, kind: input, shape index: {}]
  %s3 = inlined_call_operand.vmem [shape: f32[64,16], index: 3, kind: input, shape index: {}]
  %s4 = inlined_call_operand.vmem [shape: f32[1,16], index: 4, kind: input, shape index: {}]
  %s5 = inlined_call_operand.vmem [shape: f32[20,16], index: 5, kind: output, shape index: {}]
  %s6 = sld [smem:[#allocation0]]
  $region34: #{tpu_custom_call.1} parent=0
    _
  %s8 = ssub.s32 1, %s6
  %s9 = scalar_select 0, %s8, %s6
  $region1: #{tpu_custom_call.1} parent=0
    #allocation2 [shape = 'u8[12288]{0}', space=vmem, size = 0x3000, scoped, tag = 'input window, operand 0, single buffered']
    #allocation3 [shape = 's32[1]{0}', space=sflag, size = 0x4, scoped, tag = 'scoped memory for tpu_custom_call.1']
    %10 = vsyncpa [#allocation3], 0
    // Predicated region
    $region2: #{tpu_custom_call.1} parent=1 // pred_check
      _
    $region3: #{tpu_custom_call.1} parent=1 // pred_check_branch
      %12 = sbr.rel (0) target = $region5
    $region4: #{tpu_custom_call.1} parent=1 // pred_region
      %14 = vsyncadd [#allocation3], 0
      %s15 = sshll.u32 %s0, 4
      %s16 = int_to_ptr.hbm [resolvable:$true] %s15
      %s17 = sshll.u32 [#allocation2], 4
      %s18 = int_to_ptr.vmem [resolvable:$true] %s17
      %23 = dma.hbm_to_vmem [thread:$0]  %s16, 384, %s18, [#allocation3], 128, 128, 8
    $region5: #{tpu_custom_call.1} parent=1 // pred_fallthru
      _
    // Predicated region
    $region6: #{tpu_custom_call.1} parent=1 // pred_check
      _
    $region7: #{tpu_custom_call.1} parent=1 // pred_check_branch
      %25 = sbr.rel (0) target = $region9
    $region8: #{tpu_custom_call.1} parent=1 // pred_region
      _
    $region9: #{tpu_custom_call.1} parent=1 // pred_fallthru
      _
    // Predicated region
    $region10: #{tpu_custom_call.1} parent=1 // pred_check
      _
    $region11: #{tpu_custom_call.1} parent=1 // pred_check_branch
      %27 = sbr.rel (0) target = $region13
    $region12: #{tpu_custom_call.1} parent=1 // pred_region
      _
    $region13: #{tpu_custom_call.1} parent=1 // pred_fallthru
      _
    // Predicated region
    $region14: #{tpu_custom_call.1} parent=1 // pred_check
      _
    $region15: #{tpu_custom_call.1} parent=1 // pred_check_branch
      %29 = sbr.rel (0) target = $region17
    $region16: #{tpu_custom_call.1} parent=1 // pred_region
      _
    $region17: #{tpu_custom_call.1} parent=1 // pred_fallthru
      _
    // Predicated region
    $region18: #{tpu_custom_call.1} parent=1 // pred_check
      _
    $region19: #{tpu_custom_call.1} parent=1 // pred_check_branch
      %31 = sbr.rel (0) target = $region21
    $region20: #{tpu_custom_call.1} parent=1 // pred_region
      _
    $region21: #{tpu_custom_call.1} parent=1 // pred_fallthru
      _
    // Predicated region
    $region22: #{tpu_custom_call.1} parent=1 // pred_check
      _
    $region23: #{tpu_custom_call.1} parent=1 // pred_check_branch
      %33 = sbr.rel (0) target = $region25
    $region24: #{tpu_custom_call.1} parent=1 // pred_region
      %35 = dma.done [#allocation3], 384
    $region25: #{tpu_custom_call.1} parent=1 // pred_fallthru
      _
    %v36 = vld [vmem:[#allocation2] sm:$0xff]
    %v37 = vld [vmem:[#allocation2 + $0x8] sm:$0xff]
    %v38 = vld [vmem:[#allocation2 + $0x10] sm:$0xff]
    %v39 = vld [vmem:[%s1] sm:$0xff]
    %v40 = vld [vmem:[%s1 + $0x8] sm:$0xff]
    %v41 = vld [vmem:[%s1 + $0x10] sm:$0xff]
    %v42 = vld [vmem:[%s1 + $0x18] sm:$0xff]
    %v43 = vld [vmem:[%s1 + $0x20] sm:$0xff]
    %v44 = vld [vmem:[%s1 + $0x28] sm:$0xff]
    %v45 = vld [vmem:[%s1 + $0x30] sm:$0xff]
    %v46 = vld [vmem:[%s1 + $0x38] sm:$0xff]
    %v47 = vld [vmem:[%s2] sm:$0x1]
    %v49 = vperm.slane %v47, 0
    %vm51 = vcmask 523264
    %v53 = vsel %vm51, %v36, 0
    %v56 = vsel %vm51, %v37, 0
    %v59 = vsel %vm51, %v38, 0
    %61 = vmatpush.msra.mxu0 0.0
    %62 = vmatpush.msra.mxu0 0.0
    %63 = vmatpush.msra.mxu0 0.0
    %64 = vmatpush.msra.mxu0 0.0
    %65 = vmatpush.msra.mxu0 0.0
    %66 = vmatpush.msra.mxu0 0.0
    %67 = vmatpush.msra.mxu0 0.0
    %68 = vmatpush.msra.mxu0 0.0
    %69 = vmatpush.msra.mxu0 %v46
    %70 = vmatpush.msra.mxu0 %v45
    %71 = vmatpush.msra.mxu0 %v44
    %72 = vmatpush.msra.mxu0 %v43
    %73 = vmatpush.msra.mxu0 %v42
    %74 = vmatpush.msra.mxu0 %v41
    %75 = vmatpush.msra.mxu0 %v40
    %76 = vmatpush.msra.mxu0 %v39
    %77 = vmatmul.f32.gmra.mxu0 %v53
    %v78 = vpop.f32.mrf.mxu0
    %v79 = vadd.f32 %v49, %v78
    %80 = vmatmul.f32.gmra.mxu0 %v56
    %v81 = vpop.f32.mrf.mxu0
    %v82 = vadd.f32 %v49, %v81
    %83 = vmatmul.f32.gmra.mxu0 %v59
    %v84 = vpop.f32.mrf.mxu0
    %v85 = vadd.f32 %v49, %v84
    %86 = vdwg.mxu0
    %v87 = vmax.f32 %v79, 0.0
    %v88 = vmax.f32 %v82, 0.0
    %v89 = vmax.f32 %v85, 0.0
    %v90 = vld [vmem:[%s3] sm:$0xff]
    %v91 = vld [vmem:[%s3 + $0x8] sm:$0xff]
    %v92 = vld [vmem:[%s3 + $0x10] sm:$0xff]
    %v93 = vld [vmem:[%s3 + $0x18] sm:$0xff]
    %v94 = vld [vmem:[%s3 + $0x20] sm:$0xff]
    %v95 = vld [vmem:[%s3 + $0x28] sm:$0xff]
    %v96 = vld [vmem:[%s3 + $0x30] sm:$0xff]
    %v97 = vld [vmem:[%s3 + $0x38] sm:$0xff]
    %v98 = vld [vmem:[%s4] sm:$0x1]
    %v100 = vperm.slane %v98, 0
    %v103 = vsel %vm51, %v87, 0
    %v106 = vsel %vm51, %v88, 0
    %v109 = vsel %vm51, %v89, 0
    %111 = vmatpush.msra.mxu0 0.0
    %112 = vmatpush.msra.mxu0 0.0
    %113 = vmatpush.msra.mxu0 0.0
    %114 = vmatpush.msra.mxu0 0.0
    %115 = vmatpush.msra.mxu0 0.0
    %116 = vmatpush.msra.mxu0 0.0
    %117 = vmatpush.msra.mxu0 0.0
    %118 = vmatpush.msra.mxu0 0.0
    %119 = vmatpush.msra.mxu0 %v97
    %120 = vmatpush.msra.mxu0 %v96
    %121 = vmatpush.msra.mxu0 %v95
    %122 = vmatpush.msra.mxu0 %v94
    %123 = vmatpush.msra.mxu0 %v93
    %124 = vmatpush.msra.mxu0 %v92
    %125 = vmatpush.msra.mxu0 %v91
    %126 = vmatpush.msra.mxu0 %v90
    %127 = vmatmul.f32.gmra.mxu0 %v103
    %v128 = vpop.f32.mrf.mxu0
    %v129 = vadd.f32 %v100, %v128
    %130 = vmatmul.f32.gmra.mxu0 %v106
    %v131 = vpop.f32.mrf.mxu0
    %v132 = vadd.f32 %v100, %v131
    %133 = vmatmul.f32.gmra.mxu0 %v109
    %v134 = vpop.f32.mrf.mxu0
    %v135 = vadd.f32 %v100, %v134
    %136 = vdwg.mxu0
    %v137 = vmax.f32 %v129, 0.0
    %v138 = vmax.f32 %v132, 0.0
    %v139 = vmax.f32 %v135, 0.0
    %vm140 = vcmask 130048
    %141 = vst.msk [vmem:[%s5] sm:$0xff] %vm140, %v137
    %142 = vst.msk [vmem:[%s5 + $0x8] sm:$0xff] %vm140, %v138
    %143 = vst.msk [vmem:[%s5 + $0x10] sm:$0xff] %vm140, %v139
    // Predicated region
    $region26: #{tpu_custom_call.1} parent=1 // pred_check
      _
    $region27: #{tpu_custom_call.1} parent=1 // pred_check_branch
      %145 = sbr.rel (0) target = $region29
    $region28: #{tpu_custom_call.1} parent=1 // pred_region
      _
    $region29: #{tpu_custom_call.1} parent=1 // pred_fallthru
      _
    // Predicated region
    $region30: #{tpu_custom_call.1} parent=1 // pred_check
      _
    $region31: #{tpu_custom_call.1} parent=1 // pred_check_branch
      %147 = sbr.rel (0) target = $region33
    $region32: #{tpu_custom_call.1} parent=1 // pred_region
      _
    $region33: #{tpu_custom_call.1} parent=1 // pred_fallthru
      _
    %148 = vsyncpa [#allocation3], 1

</llo_original>
